<compile_context>
chip_gen: v6e
topology: v6e:2x2x1
jax: 0.10.0
libtpu: 0.0.40
codegen_flags: <defaults>
</compile_context>

<pallas_src>
import functools

import jax
import jax.numpy as jnp
import numpy as np
from jax import lax
from jax.experimental import pallas as pl
from jax.experimental.pallas import tpu as pltpu

FILL = -1e38          # scatter_('max') fill sentinel; rows still == FILL -> 0 (exact-compare:
                      # only wrong if a genuine feature equals exactly -1e38, practically impossible)
LANE = 128
SUBLANE = 8


def _round_up(v, m):
    return (v + m - 1) // m * m


def _res_mrconv_kernel(row_start_ref, row_count_ref, src_ref, dstloc_ref,
                       x_ref, wx_ref, wj_ref, b_ref, o_ref, *, res_scale):
    """One grid step = one node tile.

    row_start_ref : SMEM i32[NT]   first (sorted) edge index owned by tile i
    row_count_ref : SMEM i32[NT]   number of edges owned by tile i
    src_ref       : SMEM i32[E]    sorted-by-dst source node ids
    dstloc_ref    : SMEM i32[E]    destination row local to its tile (dst - tile*TN)
    x_ref         : VMEM f32[NP, CP]  full padded node features (resident)
    wx_ref, wj_ref: VMEM f32[CP, CP]  Linear weight split: x part / aggregated part
    b_ref         : VMEM f32[1,  CP]
    o_ref         : VMEM f32[TN, CP]  output tile
    """
    i = pl.program_id(0)
    tn, cp = o_ref.shape

    e0 = row_start_ref[i]
    ne = row_count_ref[i]

    row0 = pl.multiple_of(i * tn, tn)
    x_tile = x_ref[pl.ds(row0, tn), :]                          # [TN, CP]

    row_ids = lax.broadcasted_iota(jnp.int32, (tn, 1), 0)       # [TN, 1]

    def edge_body(e, acc):
        s = src_ref[e]                                          # scalar SMEM read
        d = dstloc_ref[e]                                       # scalar SMEM read
        xs = x_ref[pl.ds(s, 1), :]                              # [1, CP] gather x[src]
        hit = row_ids == d                                      # [TN, 1]
        # select+max with live set ~[TN, CP]; non-hit rows keep the FILL sentinel
        return jnp.where(hit, jnp.maximum(acc, xs), acc)

    acc0 = jnp.full((tn, cp), FILL, jnp.float32)
    acc = lax.fori_loop(e0, e0 + ne, edge_body, acc0)           # dynamic trip count

    # xj[t] = max_{e: dst=t} x[src_e] - x[t]   (per channel); nodes w/o in-edges -> 0
    xj = jnp.where(acc == FILL, 0.0, acc - x_tile)

    y = jnp.dot(x_tile, wx_ref[...], preferred_element_type=jnp.float32)
    y = y + jnp.dot(xj, wj_ref[...], preferred_element_type=jnp.float32)
    y = jnp.maximum(y + b_ref[...], 0.0)                        # MLP act='relu', norm=None
    o_ref[...] = (y + res_scale * x_tile).astype(o_ref.dtype)   # residual


def _vmem_limit_bytes(resident_bytes):
    # Conservative cap safe on v7x (64 MiB / TensorCore); raise on v5e/v6e (128 MiB VMEM).
    cap = 48 << 20
    try:
        kind = jax.devices()[0].device_kind.lower()
        if ("v5" in kind) or ("v6" in kind):
            cap = 96 << 20
    except Exception:
        pass
    need = 3 * resident_bytes + (4 << 20)       # double-buffer + scratch headroom
    return int(min(max(need, 32 << 20), cap))


def res_graph_block(x, edge_index, weight, bias, *, res_scale=1.0, node_tile=128):
    """ResGraphBlock(channels, conv='mr').forward  ->  (features, edge_index).

    x: f32[N, C]; edge_index: i32[2, E]; weight: f32[2C, C]; bias: f32[C].
    """
    n, c = x.shape
    cout = weight.shape[1]
    assert weight.shape[0] == 2 * c and cout == c, "ResGraphBlock: in == out == channels"
    assert node_tile % SUBLANE == 0

    e = edge_index.shape[1]
    cp = _round_up(c, LANE)
    np_pad = _round_up(max(n, node_tile), node_tile)
    nt = np_pad // node_tile

    # zero-pad features / params (exact: padded rows/cols are all-zero, sliced off below)
    x_pad = jnp.zeros((np_pad, cp), jnp.float32).at[:n, :c].set(x.astype(jnp.float32))
    # Optional per-generation knob: cast wx/wj (and x_pad) to bf16 for ~2x MXU rate on
    # v5e/v6e at the cost of bf16 rounding; kept f32 here to hold the 1e-4 tolerance.
    wx = jnp.zeros((cp, cp), jnp.float32).at[:c, :c].set(weight[:c].astype(jnp.float32))
    wj = jnp.zeros((cp, cp), jnp.float32).at[:c, :c].set(weight[c:].astype(jnp.float32))
    b_pad = jnp.zeros((1, cp), jnp.float32).at[0, :c].set(bias.astype(jnp.float32))

    # sort edges by destination; per-node-tile edge ranges (MoE-style group offsets)
    if e > 0:
        src = edge_index[0].astype(jnp.int32)
        dst = edge_index[1].astype(jnp.int32)
        order = jnp.argsort(dst)
        src_s = src[order]
        dst_s = dst[order]
        tile_id = dst_s // node_tile
        dst_loc = (dst_s - tile_id * node_tile).astype(jnp.int32)
        counts = jnp.zeros((nt,), jnp.int32).at[tile_id].add(1)
        row_start = jnp.concatenate(
            [jnp.zeros((1,), jnp.int32), jnp.cumsum(counts)[:-1].astype(jnp.int32)])
    else:
        src_s = jnp.zeros((1,), jnp.int32)
        dst_loc = jnp.full((1,), -1, jnp.int32)
        counts = jnp.zeros((nt,), jnp.int32)
        row_start = jnp.zeros((nt,), jnp.int32)

    resident_bytes = 4 * (np_pad * cp + 2 * cp * cp + cp + 2 * node_tile * cp)

    grid_spec = pltpu.PrefetchScalarGridSpec(
        num_scalar_prefetch=4,                       # row_start, counts, src, dst_local -> SMEM
        grid=(nt,),
        in_specs=[
            pl.BlockSpec((np_pad, cp), lambda i, rs, rc, ss, dl: (0, 0)),   # x (resident)
            pl.BlockSpec((cp, cp),     lambda i, rs, rc, ss, dl: (0, 0)),   # W_x
            pl.BlockSpec((cp, cp),     lambda i, rs, rc, ss, dl: (0, 0)),   # W_xj
            pl.BlockSpec((1, cp),      lambda i, rs, rc, ss, dl: (0, 0)),   # bias
        ],
        out_specs=pl.BlockSpec((node_tile, cp), lambda i, rs, rc, ss, dl: (i, 0)),
        scratch_shapes=(),
    )

    out_pad = pl.pallas_call(
        functools.partial(_res_mrconv_kernel, res_scale=float(res_scale)),
        out_shape=jax.ShapeDtypeStruct((np_pad, cp), jnp.float32),
        grid_spec=grid_spec,
        compiler_params=pltpu.CompilerParams(
            dimension_semantics=("parallel",),               # node tiles shard across cores
            vmem_limit_bytes=_vmem_limit_bytes(resident_bytes),
        ),
    )(row_start, counts, src_s, dst_loc, x_pad, wx, wj, b_pad)

    return out_pad[:n, :c], edge_index


def res_graph_block_reference(x, edge_index, weight, bias, res_scale=1.0):
    """Pure-JAX reference mirroring the PyTorch forward."""
    n, c = x.shape
    src, dst = edge_index[0], edge_index[1]
    diff = x[src] - x[dst]
    xj = jnp.full((n, c), -jnp.inf, x.dtype).at[dst].max(diff)
    xj = jnp.where(jnp.isneginf(xj), 0.0, xj)          # nodes without incoming edges -> 0
    y = jnp.maximum(jnp.concatenate([x, xj], axis=1) @ weight + bias, 0.0)
    return y + res_scale * x


if __name__ == "__main__":
    # ResGraphBlock(channels=64): 100 nodes, 300 random edges (non-multiple sizes hit padding path)
    N, C, E = 100, 64, 300

    key = jax.random.PRNGKey(0)
    kx, ks, kd, kw, kb = jax.random.split(key, 5)

    x = jax.random.normal(kx, (N, C), dtype=jnp.float32)
    edge_index = jnp.stack([
        jax.random.randint(ks, (E,), 0, N, dtype=jnp.int32),
        jax.random.randint(kd, (E,), 0, N, dtype=jnp.int32),
    ])

    # deterministic Linear(2C -> C) parameters, PyTorch-like init scale
    bound = 1.0 / np.sqrt(2 * C)
    weight = jax.random.uniform(kw, (2 * C, C), jnp.float32, -bound, bound)
    bias = jax.random.uniform(kb, (C,), jnp.float32, -bound, bound)

    out, _ = res_graph_block(x, edge_index, weight, bias, res_scale=1.0)
    out = jax.block_until_ready(out)

    ref = res_graph_block_reference(x, edge_index, weight, bias, 1.0)
    np.testing.assert_allclose(np.asarray(out), np.asarray(ref), rtol=1e-4, atol=1e-4)

    print("KERNEL_OK")
</pallas_src>

<mosaic_0001>
module attributes {stable_mosaic.version = 11 : i64} {
  func.func @_res_mrconv_kernel(%arg0: i32, %arg1: memref<1xi32, #tpu.memory_space<smem>>, %arg2: memref<1xi32, #tpu.memory_space<smem>>, %arg3: memref<300xi32, #tpu.memory_space<smem>>, %arg4: memref<300xi32, #tpu.memory_space<smem>>, %arg5: memref<128x128xf32, #tpu.memory_space<vmem>>, %arg6: memref<128x128xf32, #tpu.memory_space<vmem>>, %arg7: memref<128x128xf32, #tpu.memory_space<vmem>>, %arg8: memref<1x128xf32, #tpu.memory_space<vmem>>, %arg9: memref<128x128xf32, #tpu.memory_space<vmem>>) attributes {dimension_semantics = [#tpu.dimension_semantics<parallel>], iteration_bounds = array<i64: 1>, scalar_prefetch = 4 : i64, scratch_operands = 0 : i64, tpu.core_type = #tpu.core_type<tc>, window_params = [{pipeline_mode = #tpu.pipeline_mode<synchronous>, transform_indices = @transform_0, window_bounds = array<i64: 128, 128>}, {pipeline_mode = #tpu.pipeline_mode<synchronous>, transform_indices = @transform_1, window_bounds = array<i64: 128, 128>}, {pipeline_mode = #tpu.pipeline_mode<synchronous>, transform_indices = @transform_2, window_bounds = array<i64: 128, 128>}, {pipeline_mode = #tpu.pipeline_mode<synchronous>, transform_indices = @transform_3, window_bounds = array<i64: 1, 128>}, {transform_indices = @transform_4, window_bounds = array<i64: 128, 128>}]} {
    %0 = arith.index_cast %arg0 : i32 to index
    %1 = memref.load %arg1[%0] : memref<1xi32, #tpu.memory_space<smem>>
    %2 = arith.index_cast %arg0 : i32 to index
    %3 = memref.load %arg2[%2] : memref<1xi32, #tpu.memory_space<smem>>
    %c128_i32 = arith.constant 128 : i32
    %4 = arith.muli %arg0, %c128_i32 : i32
    %5 = tpu.assume_multiple %4, 128 : i32
    %6 = arith.index_cast %5 : i32 to index
    %c0 = arith.constant 0 : index
    %7 = vector.load %arg5[%6, %c0] : memref<128x128xf32, #tpu.memory_space<vmem>>, vector<128x128xf32>
    %8 = tpu.iota {dimensions = array<i32: 0>} : vector<128x1xi32>
    %cst = arith.constant -9.99999968E+37 : f32
    %9 = vector.broadcast %cst : f32 to vector<128x128xf32>
    %10 = arith.addi %1, %3 : i32
    %11 = arith.subi %10, %1 : i32
    %12 = arith.addi %1, %11 : i32
    %c1_i32 = arith.constant 1 : i32
    %13 = scf.for %arg10 = %1 to %12 step %c1_i32 iter_args(%arg11 = %9) -> (vector<128x128xf32>)  : i32 {
      %33 = arith.index_cast %arg10 : i32 to index
      %34 = memref.load %arg3[%33] : memref<300xi32, #tpu.memory_space<smem>>
      %35 = arith.index_cast %arg10 : i32 to index
      %36 = memref.load %arg4[%35] : memref<300xi32, #tpu.memory_space<smem>>
      %37 = arith.index_cast %34 : i32 to index
      %c0_14 = arith.constant 0 : index
      %38 = vector.load %arg5[%37, %c0_14] : memref<128x128xf32, #tpu.memory_space<vmem>>, vector<1x128xf32>
      %39 = vector.broadcast %36 : i32 to vector<128x1xi32>
      %40 = arith.cmpi eq, %8, %39 : vector<128x1xi32>
      %41 = vector.broadcast %38 : vector<1x128xf32> to vector<128x128xf32>
      %42 = arith.maximumf %arg11, %41 : vector<128x128xf32>
      %43 = vector.shape_cast %40 : vector<128x1xi1> to vector<128x1xi1>
      %44 = vector.broadcast %43 : vector<128x1xi1> to vector<128x128xi1>
      %45 = arith.select %44, %42, %arg11 : vector<128x128xi1>, vector<128x128xf32>
      scf.yield %45 : vector<128x128xf32>
    }
    %cst_0 = arith.constant -9.99999968E+37 : f32
    %14 = vector.broadcast %cst_0 : f32 to vector<128x128xf32>
    %15 = arith.cmpf oeq, %13, %14 : vector<128x128xf32>
    %16 = arith.subf %13, %7 : vector<128x128xf32>
    %cst_1 = arith.constant 0.000000e+00 : f32
    %17 = vector.broadcast %cst_1 : f32 to vector<128x128xf32>
    %18 = arith.select %15, %17, %16 : vector<128x128xi1>, vector<128x128xf32>
    %c0_2 = arith.constant 0 : index
    %c0_3 = arith.constant 0 : index
    %19 = vector.load %arg6[%c0_2, %c0_3] : memref<128x128xf32, #tpu.memory_space<vmem>>, vector<128x128xf32>
    %cst_4 = arith.constant dense<0.000000e+00> : vector<128x128xf32>
    %20 = tpu.matmul %7, %19, %cst_4 {dimension_numbers = #tpu.dot_dimension_numbers<[1], [0], [0], [1], [0, 0, 1, 1], [], []>} : vector<128x128xf32>, vector<128x128xf32>, vector<128x128xf32> -> vector<128x128xf32>
    %c0_5 = arith.constant 0 : index
    %c0_6 = arith.constant 0 : index
    %21 = vector.load %arg7[%c0_5, %c0_6] : memref<128x128xf32, #tpu.memory_space<vmem>>, vector<128x128xf32>
    %cst_7 = arith.constant dense<0.000000e+00> : vector<128x128xf32>
    %22 = tpu.matmul %18, %21, %cst_7 {dimension_numbers = #tpu.dot_dimension_numbers<[1], [0], [0], [1], [0, 0, 1, 1], [], []>} : vector<128x128xf32>, vector<128x128xf32>, vector<128x128xf32> -> vector<128x128xf32>
    %23 = arith.addf %20, %22 : vector<128x128xf32>
    %c0_8 = arith.constant 0 : index
    %c0_9 = arith.constant 0 : index
    %24 = vector.load %arg8[%c0_8, %c0_9] : memref<1x128xf32, #tpu.memory_space<vmem>>, vector<1x128xf32>
    %25 = vector.broadcast %24 : vector<1x128xf32> to vector<128x128xf32>
    %26 = arith.addf %23, %25 : vector<128x128xf32>
    %cst_10 = arith.constant 0.000000e+00 : f32
    %27 = vector.broadcast %cst_10 : f32 to vector<128x128xf32>
    %28 = arith.maximumf %26, %27 : vector<128x128xf32>
    %cst_11 = arith.constant 1.000000e+00 : f32
    %29 = vector.broadcast %cst_11 : f32 to vector<128x128xf32>
    %30 = arith.mulf %29, %7 : vector<128x128xf32>
    %31 = arith.addf %28, %30 : vector<128x128xf32>
    %c0_12 = arith.constant 0 : index
    %c0_13 = arith.constant 0 : index
    %32 = vector.load %arg9[%c0_12, %c0_13] : memref<128x128xf32, #tpu.memory_space<vmem>>, vector<128x128xf32>
    tpu.vector_store %arg9[%c0_12, %c0_13], %31 {strides = array<i32>} : memref<128x128xf32, #tpu.memory_space<vmem>>, vector<128x128xf32>,
    return
  }
  func.func @transform_0(%arg0: i32, %arg1: memref<1xi32, #tpu.memory_space<smem>>, %arg2: memref<1xi32, #tpu.memory_space<smem>>, %arg3: memref<300xi32, #tpu.memory_space<smem>>, %arg4: memref<300xi32, #tpu.memory_space<smem>>) -> (i32, i32) {
    %c0_i32 = arith.constant 0 : i32
    %c0_i32_0 = arith.constant 0 : i32
    %c0_i32_1 = arith.constant 0 : i32
    return %c0_i32, %c0_i32_0 : i32, i32
  }
  func.func @transform_1(%arg0: i32, %arg1: memref<1xi32, #tpu.memory_space<smem>>, %arg2: memref<1xi32, #tpu.memory_space<smem>>, %arg3: memref<300xi32, #tpu.memory_space<smem>>, %arg4: memref<300xi32, #tpu.memory_space<smem>>) -> (i32, i32) {
    %c0_i32 = arith.constant 0 : i32
    %c0_i32_0 = arith.constant 0 : i32
    %c0_i32_1 = arith.constant 0 : i32
    return %c0_i32, %c0_i32_0 : i32, i32
  }
  func.func @transform_2(%arg0: i32, %arg1: memref<1xi32, #tpu.memory_space<smem>>, %arg2: memref<1xi32, #tpu.memory_space<smem>>, %arg3: memref<300xi32, #tpu.memory_space<smem>>, %arg4: memref<300xi32, #tpu.memory_space<smem>>) -> (i32, i32) {
    %c0_i32 = arith.constant 0 : i32
    %c0_i32_0 = arith.constant 0 : i32
    %c0_i32_1 = arith.constant 0 : i32
    return %c0_i32, %c0_i32_0 : i32, i32
  }
  func.func @transform_3(%arg0: i32, %arg1: memref<1xi32, #tpu.memory_space<smem>>, %arg2: memref<1xi32, #tpu.memory_space<smem>>, %arg3: memref<300xi32, #tpu.memory_space<smem>>, %arg4: memref<300xi32, #tpu.memory_space<smem>>) -> (i32, i32) {
    %c0_i32 = arith.constant 0 : i32
    %c0_i32_0 = arith.constant 0 : i32
    %c0_i32_1 = arith.constant 0 : i32
    return %c0_i32, %c0_i32_0 : i32, i32
  }
  func.func @transform_4(%arg0: i32, %arg1: memref<1xi32, #tpu.memory_space<smem>>, %arg2: memref<1xi32, #tpu.memory_space<smem>>, %arg3: memref<300xi32, #tpu.memory_space<smem>>, %arg4: memref<300xi32, #tpu.memory_space<smem>>) -> (i32, i32) {
    %c0_i32 = arith.constant 0 : i32
    %c0_i32_0 = arith.constant 0 : i32
    return %arg0, %c0_i32 : i32, i32
  }
}

</mosaic_0001>

<llo_original>
// kernel: tpu_custom_call.1
$region0: #{tpu_custom_call.1}
  #allocation0 [shape = 'u32[]', space=smem, size = 0x4, offset = 0x4, fixed_abs, tag = 'smem constant byte address 0x4 - core index']
  #allocation1 [shape = 'u32[144,128]{1,0:T(1,128)}', space=vmem, size = 0x12000, scoped, tag = 'internal scratch']
  #allocation2 [shape = 's32[1]{0}', space=sflag, size = 0x4, scoped, tag = 'scoped memory for tpu_custom_call.1']
  #allocation3 [shape = 's32[1]{0:T(128)S(6)}', space=smem, size = 0x200, scoped, tag = 'prefetched SMEM operand 0']
  #allocation4 [shape = 's32[1]{0:T(128)S(6)}', space=smem, size = 0x200, scoped, tag = 'prefetched SMEM operand 1']
  #allocation5 [shape = 'u8[1536]{0}', space=smem, size = 0x600, scoped, tag = 'prefetched SMEM operand 2']
  #allocation6 [shape = 'u8[1536]{0}', space=smem, size = 0x600, scoped, tag = 'prefetched SMEM operand 3']
  %s0 = inlined_call_operand.<no memory space> [shape: s32[1], index: 0, kind: input, shape index: {}]
  %s1 = inlined_call_operand.<no memory space> [shape: s32[1], index: 1, kind: input, shape index: {}]
  %s2 = inlined_call_operand.vmem [shape: s32[300], index: 2, kind: input, shape index: {}]
  %s3 = inlined_call_operand.hbm [shape: s32[300], index: 3, kind: input, shape index: {}]
  %s4 = inlined_call_operand.hbm [shape: f32[128,128], index: 4, kind: input, shape index: {}]
  %s5 = inlined_call_operand.hbm [shape: f32[128,128], index: 5, kind: input, shape index: {}]
  %s6 = inlined_call_operand.hbm [shape: f32[128,128], index: 6, kind: input, shape index: {}]
  %s7 = inlined_call_operand.vmem [shape: f32[1,128], index: 7, kind: input, shape index: {}]
  %s8 = inlined_call_operand.hbm [shape: f32[128,128], index: 8, kind: output, shape index: {}]
  %s9 = sld [smem:[#allocation0]]
  $region45: #{tpu_custom_call.1} parent=0
    _
  %s11 = ssub.s32 1, %s9
  %s12 = scalar_select 0, %s11, %s9
  %13 = sst [smem:[#allocation3]] %s0
  %14 = sst [smem:[#allocation4]] %s1
  %s15 = sshll.u32 %s2, 4
  %s16 = int_to_ptr.vmem [resolvable:$true] %s15
  %18 = dma.vmem_to_smem %s16, 48, [#allocation5], [#allocation2]
  %20 = dma.hbm_to_smem %s3, 48, [#allocation6], [#allocation2]
  %21 = dma.done [#allocation2], 96
  %22 = sfence
  $region1: #{tpu_custom_call.1} parent=0
    #allocation7 [shape = 'u8[65536]{0}', space=vmem, size = 0x10000, scoped, tag = 'input window, operand 4, single buffered']
    #allocation8 [shape = 's32[1]{0}', space=sflag, size = 0x4, scoped, tag = 'scoped memory for tpu_custom_call.1']
    #allocation9 [shape = 's32[1]{0}', space=sflag, size = 0x4, scoped, tag = 'scoped memory for tpu_custom_call.1']
    #allocation10 [shape = 'u8[65536]{0}', space=vmem, size = 0x10000, scoped, tag = 'input window, operand 5, single buffered']
    #allocation11 [shape = 's32[1]{0}', space=sflag, size = 0x4, scoped, tag = 'scoped memory for tpu_custom_call.1']
    #allocation12 [shape = 'u8[65536]{0}', space=vmem, size = 0x10000, scoped, tag = 'input window, operand 6, single buffered']
    #allocation13 [shape = 'u8[65536]{0}', space=vmem, size = 0x10000, scoped, tag = 'output window, operand 0, single buffered']
    %23 = vsyncpa [#allocation8], 0
    %24 = vsyncpa [#allocation11], 0
    %25 = vsyncpa [#allocation9], 0
    // Predicated region
    $region2: #{tpu_custom_call.1} parent=1 // pred_check
      _
    $region3: #{tpu_custom_call.1} parent=1 // pred_check_branch
      %27 = sbr.rel (0) target = $region5
    $region4: #{tpu_custom_call.1} parent=1 // pred_region
      %s29 = ssub.s32 2048, 2048
      %30 = vsyncadd [#allocation8], %s29
      %s31 = sshll.u32 [#allocation7], 4
      %s32 = int_to_ptr.vmem [resolvable:$true] %s31
      %37 = dma.hbm_to_vmem [thread:$0]  %s4, 2048, %s32, [#allocation8], 128, 128, 8
    $region5: #{tpu_custom_call.1} parent=1 // pred_fallthru
      _
    // Predicated region
    $region6: #{tpu_custom_call.1} parent=1 // pred_check
      _
    $region7: #{tpu_custom_call.1} parent=1 // pred_check_branch
      %39 = sbr.rel (0) target = $region9
    $region8: #{tpu_custom_call.1} parent=1 // pred_region
      %s41 = ssub.s32 2048, 2048
      %42 = vsyncadd [#allocation11], %s41
      %s43 = sshll.u32 [#allocation10], 4
      %s44 = int_to_ptr.vmem [resolvable:$true] %s43
      %49 = dma.hbm_to_vmem [thread:$0]  %s5, 2048, %s44, [#allocation11], 128, 128, 8
    $region9: #{tpu_custom_call.1} parent=1 // pred_fallthru
      _
    // Predicated region
    $region10: #{tpu_custom_call.1} parent=1 // pred_check
      _
    $region11: #{tpu_custom_call.1} parent=1 // pred_check_branch
      %51 = sbr.rel (0) target = $region13
    $region12: #{tpu_custom_call.1} parent=1 // pred_region
      %s53 = ssub.s32 2048, 2048
      %54 = vsyncadd [#allocation11], %s53
      %s55 = sshll.u32 [#allocation12], 4
      %s56 = int_to_ptr.vmem [resolvable:$true] %s55
      %61 = dma.hbm_to_vmem [thread:$0]  %s6, 2048, %s56, [#allocation11], 128, 128, 8
    $region13: #{tpu_custom_call.1} parent=1 // pred_fallthru
      _
    // Predicated region
    $region14: #{tpu_custom_call.1} parent=1 // pred_check
      _
    $region15: #{tpu_custom_call.1} parent=1 // pred_check_branch
      %63 = sbr.rel (0) target = $region17
    $region16: #{tpu_custom_call.1} parent=1 // pred_region
      _
    $region17: #{tpu_custom_call.1} parent=1 // pred_fallthru
      _
    // Predicated region
    $region18: #{tpu_custom_call.1} parent=1 // pred_check
      _
    $region19: #{tpu_custom_call.1} parent=1 // pred_check_branch
      %65 = sbr.rel (0) target = $region21
    $region20: #{tpu_custom_call.1} parent=1 // pred_region
      %66 = dma.done [#allocation8], 2048
    $region21: #{tpu_custom_call.1} parent=1 // pred_fallthru
      _
    // Predicated region
    $region22: #{tpu_custom_call.1} parent=1 // pred_check
      _
    $region23: #{tpu_custom_call.1} parent=1 // pred_check_branch
      %68 = sbr.rel (0) target = $region25
    $region24: #{tpu_custom_call.1} parent=1 // pred_region
      %69 = dma.done [#allocation11], 2048
    $region25: #{tpu_custom_call.1} parent=1 // pred_fallthru
      _
    // Predicated region
    $region26: #{tpu_custom_call.1} parent=1 // pred_check
      _
    $region27: #{tpu_custom_call.1} parent=1 // pred_check_branch
      %71 = sbr.rel (0) target = $region29
    $region28: #{tpu_custom_call.1} parent=1 // pred_region
      %72 = dma.done [#allocation11], 2048
    $region29: #{tpu_custom_call.1} parent=1 // pred_fallthru
      _
    %s73 = sld [smem:[#allocation3]]
    %s74 = sld [smem:[#allocation4]]
    %s75 = smul.u32 0, 128
    %s76 = scalar_lea.vmem [#allocation7], %s75
    %v77 = vld [vmem:[%s76] sm:$0xff]
    %v78 = vld [vmem:[%s76 + $0x8] sm:$0xff]
    %v79 = vld [vmem:[%s76 + $0x10] sm:$0xff]
    %v80 = vld [vmem:[%s76 + $0x18] sm:$0xff]
    %v81 = vld [vmem:[%s76 + $0x20] sm:$0xff]
    %v82 = vld [vmem:[%s76 + $0x28] sm:$0xff]
    %v83 = vld [vmem:[%s76 + $0x30] sm:$0xff]
    %v84 = vld [vmem:[%s76 + $0x38] sm:$0xff]
    %v85 = vld [vmem:[%s76 + $0x40] sm:$0xff]
    %v86 = vld [vmem:[%s76 + $0x48] sm:$0xff]
    %v87 = vld [vmem:[%s76 + $0x50] sm:$0xff]
    %v88 = vld [vmem:[%s76 + $0x58] sm:$0xff]
    %v89 = vld [vmem:[%s76 + $0x60] sm:$0xff]
    %v90 = vld [vmem:[%s76 + $0x68] sm:$0xff]
    %v91 = vld [vmem:[%s76 + $0x70] sm:$0xff]
    %v92 = vld [vmem:[%s76 + $0x78] sm:$0xff]
    %v93 = vlaneseq
    %v94 = vshrl.u32 %v93, 7
    %v95 = vadd.s32 %v94, 8
    %v96 = vadd.s32 %v94, 16
    %v97 = vadd.s32 %v94, 24
    %v98 = vadd.s32 %v94, 32
    %v99 = vadd.s32 %v94, 40
    %v100 = vadd.s32 %v94, 48
    %v101 = vadd.s32 %v94, 56
    %v102 = vadd.s32 %v94, 64
    %v103 = vadd.s32 %v94, 72
    %v104 = vadd.s32 %v94, 80
    %v105 = vadd.s32 %v94, 88
    %v106 = vadd.s32 %v94, 96
    %v107 = vadd.s32 %v94, 104
    %v108 = vadd.s32 %v94, 112
    %v109 = vadd.s32 %v94, 120
    %s110 = sadd.s32 %s73, %s74
    // While loop
    $region30: #{tpu_custom_call.1} parent=1 // loop_pre_header
      _
    $region31: #{tpu_custom_call.1} parent=1 // loop_header
      %s112 = sphi %s73, %s114
      %p113 = scmp.ge.s32.totalorder %s112, %s110
      %v117 = vphi -1e+38, %v206
      %v118 = vphi -1e+38, %v207
      %v119 = vphi -1e+38, %v208
      %v120 = vphi -1e+38, %v209
      %v121 = vphi -1e+38, %v210
      %v122 = vphi -1e+38, %v211
      %v123 = vphi -1e+38, %v212
      %v124 = vphi -1e+38, %v213
      %v125 = vphi -1e+38, %v214
      %v126 = vphi -1e+38, %v215
      %v127 = vphi -1e+38, %v216
      %v128 = vphi -1e+38, %v217
      %v129 = vphi -1e+38, %v218
      %v130 = vphi -1e+38, %v219
      %v131 = vphi -1e+38, %v220
      %v132 = vphi -1e+38, %v221
    $region32: #{tpu_custom_call.1} parent=1 // loop_header_branch
      %116 = sbr.rel (%p113) target = $region36
    $region33: #{tpu_custom_call.1} parent=1 // loop_body
      %s133 = sld [smem:[#allocation5 + %s112]]
      %s134 = sld [smem:[#allocation6 + %s112]]
      %s135 = scalar_lea.vmem [#allocation7], %s133
      %v136 = vld [vmem:[%s135] sm:$0x1]
      %v137 = vstv %s134
      %vm138 = vcmp.eq.s32.totalorder %v94, %v137
      %vm139 = vcmp.eq.s32.totalorder %v95, %v137
      %vm140 = vcmp.eq.s32.totalorder %v96, %v137
      %vm141 = vcmp.eq.s32.totalorder %v97, %v137
      %vm142 = vcmp.eq.s32.totalorder %v98, %v137
      %vm143 = vcmp.eq.s32.totalorder %v99, %v137
      %vm144 = vcmp.eq.s32.totalorder %v100, %v137
      %vm145 = vcmp.eq.s32.totalorder %v101, %v137
      %vm146 = vcmp.eq.s32.totalorder %v102, %v137
      %vm147 = vcmp.eq.s32.totalorder %v103, %v137
      %vm148 = vcmp.eq.s32.totalorder %v104, %v137
      %vm149 = vcmp.eq.s32.totalorder %v105, %v137
      %vm150 = vcmp.eq.s32.totalorder %v106, %v137
      %vm151 = vcmp.eq.s32.totalorder %v107, %v137
      %vm152 = vcmp.eq.s32.totalorder %v108, %v137
      %vm153 = vcmp.eq.s32.totalorder %v109, %v137
      %v154 = vlaneseq
      %v155 = vshrl.u32 %v154, 7
      %v156 = vsub.s32 0, %v155
      %v157 = vrot.slane %v136, %v156
      %v158 = vmax.f32 %v117, %v157
      %v159 = vmax.f32 %v118, %v157
      %v160 = vmax.f32 %v119, %v157
      %v161 = vmax.f32 %v120, %v157
      %v162 = vmax.f32 %v121, %v157
      %v163 = vmax.f32 %v122, %v157
      %v164 = vmax.f32 %v123, %v157
      %v165 = vmax.f32 %v124, %v157
      %v166 = vmax.f32 %v125, %v157
      %v167 = vmax.f32 %v126, %v157
      %v168 = vmax.f32 %v127, %v157
      %v169 = vmax.f32 %v128, %v157
      %v170 = vmax.f32 %v129, %v157
      %v171 = vmax.f32 %v130, %v157
      %v172 = vmax.f32 %v131, %v157
      %v173 = vmax.f32 %v132, %v157
      %v174 = vsel %vm138, 1, 0
      %v175 = vsel %vm139, 1, 0
      %v176 = vsel %vm140, 1, 0
      %v177 = vsel %vm141, 1, 0
      %v178 = vsel %vm142, 1, 0
      %v179 = vsel %vm143, 1, 0
      %v180 = vsel %vm144, 1, 0
      %v181 = vsel %vm145, 1, 0
      %v182 = vsel %vm146, 1, 0
      %v183 = vsel %vm147, 1, 0
      %v184 = vsel %vm148, 1, 0
      %v185 = vsel %vm149, 1, 0
      %v186 = vsel %vm150, 1, 0
      %v187 = vsel %vm151, 1, 0
      %v188 = vsel %vm152, 1, 0
      %v189 = vsel %vm153, 1, 0
      %vm190 = vcmp.eq.s32.totalorder %v174, 1
      %vm191 = vcmp.eq.s32.totalorder %v175, 1
      %vm192 = vcmp.eq.s32.totalorder %v176, 1
      %vm193 = vcmp.eq.s32.totalorder %v177, 1
      %vm194 = vcmp.eq.s32.totalorder %v178, 1
      %vm195 = vcmp.eq.s32.totalorder %v179, 1
      %vm196 = vcmp.eq.s32.totalorder %v180, 1
      %vm197 = vcmp.eq.s32.totalorder %v181, 1
      %vm198 = vcmp.eq.s32.totalorder %v182, 1
      %vm199 = vcmp.eq.s32.totalorder %v183, 1
      %vm200 = vcmp.eq.s32.totalorder %v184, 1
      %vm201 = vcmp.eq.s32.totalorder %v185, 1
      %vm202 = vcmp.eq.s32.totalorder %v186, 1
      %vm203 = vcmp.eq.s32.totalorder %v187, 1
      %vm204 = vcmp.eq.s32.totalorder %v188, 1
      %vm205 = vcmp.eq.s32.totalorder %v189, 1
      %v206 = vsel %vm190, %v158, %v117
      %v207 = vsel %vm191, %v159, %v118
      %v208 = vsel %vm192, %v160, %v119
      %v209 = vsel %vm193, %v161, %v120
      %v210 = vsel %vm194, %v162, %v121
      %v211 = vsel %vm195, %v163, %v122
      %v212 = vsel %vm196, %v164, %v123
      %v213 = vsel %vm197, %v165, %v124
      %v214 = vsel %vm198, %v166, %v125
      %v215 = vsel %vm199, %v167, %v126
      %v216 = vsel %vm200, %v168, %v127
      %v217 = vsel %vm201, %v169, %v128
      %v218 = vsel %vm202, %v170, %v129
      %v219 = vsel %vm203, %v171, %v130
      %v220 = vsel %vm204, %v172, %v131
      %v221 = vsel %vm205, %v173, %v132
    $region34: #{tpu_custom_call.1} parent=1 // loop_footer
      %s114 = sadd.s32 %s112, 1
    $region35: #{tpu_custom_call.1} parent=1 // loop_footer_branch
      %111 = sbr.rel target = $region31
    $region36: #{tpu_custom_call.1} parent=1 // loop_exit
      _
    %vm222 = vcmp.eq.f32.partialorder %v117, -1e+38
    %vm223 = vcmp.eq.f32.partialorder %v118, -1e+38
    %vm224 = vcmp.eq.f32.partialorder %v119, -1e+38
    %vm225 = vcmp.eq.f32.partialorder %v120, -1e+38
    %vm226 = vcmp.eq.f32.partialorder %v121, -1e+38
    %vm227 = vcmp.eq.f32.partialorder %v122, -1e+38
    %vm228 = vcmp.eq.f32.partialorder %v123, -1e+38
    %vm229 = vcmp.eq.f32.partialorder %v124, -1e+38
    %vm230 = vcmp.eq.f32.partialorder %v125, -1e+38
    %vm231 = vcmp.eq.f32.partialorder %v126, -1e+38
    %vm232 = vcmp.eq.f32.partialorder %v127, -1e+38
    %vm233 = vcmp.eq.f32.partialorder %v128, -1e+38
    %vm234 = vcmp.eq.f32.partialorder %v129, -1e+38
    %vm235 = vcmp.eq.f32.partialorder %v130, -1e+38
    %vm236 = vcmp.eq.f32.partialorder %v131, -1e+38
    %vm237 = vcmp.eq.f32.partialorder %v132, -1e+38
    %v238 = vsub.f32 %v117, %v77
    %v239 = vsub.f32 %v118, %v78
    %v240 = vsub.f32 %v119, %v79
    %v241 = vsub.f32 %v120, %v80
    %v242 = vsub.f32 %v121, %v81
    %v243 = vsub.f32 %v122, %v82
    %v244 = vsub.f32 %v123, %v83
    %v245 = vsub.f32 %v124, %v84
    %v246 = vsub.f32 %v125, %v85
    %v247 = vsub.f32 %v126, %v86
    %v248 = vsub.f32 %v127, %v87
    %v249 = vsub.f32 %v128, %v88
    %v250 = vsub.f32 %v129, %v89
    %v251 = vsub.f32 %v130, %v90
    %v252 = vsub.f32 %v131, %v91
    %v253 = vsub.f32 %v132, %v92
    %v254 = vsel %vm222, 0.0, %v238
    %v255 = vsel %vm223, 0.0, %v239
    %v256 = vsel %vm224, 0.0, %v240
    %v257 = vsel %vm225, 0.0, %v241
    %v258 = vsel %vm226, 0.0, %v242
    %v259 = vsel %vm227, 0.0, %v243
    %v260 = vsel %vm228, 0.0, %v244
    %v261 = vsel %vm229, 0.0, %v245
    %v262 = vsel %vm230, 0.0, %v246
    %v263 = vsel %vm231, 0.0, %v247
    %v264 = vsel %vm232, 0.0, %v248
    %v265 = vsel %vm233, 0.0, %v249
    %v266 = vsel %vm234, 0.0, %v250
    %v267 = vsel %vm235, 0.0, %v251
    %v268 = vsel %vm236, 0.0, %v252
    %v269 = vsel %vm237, 0.0, %v253
    %v270 = vld [vmem:[#allocation10] sm:$0xff]
    %v271 = vld [vmem:[#allocation10 + $0x8] sm:$0xff]
    %v272 = vld [vmem:[#allocation10 + $0x10] sm:$0xff]
    %v273 = vld [vmem:[#allocation10 + $0x18] sm:$0xff]
    %v274 = vld [vmem:[#allocation10 + $0x20] sm:$0xff]
    %v275 = vld [vmem:[#allocation10 + $0x28] sm:$0xff]
    %v276 = vld [vmem:[#allocation10 + $0x30] sm:$0xff]
    %v277 = vld [vmem:[#allocation10 + $0x38] sm:$0xff]
    %v278 = vld [vmem:[#allocation10 + $0x40] sm:$0xff]
    %v279 = vld [vmem:[#allocation10 + $0x48] sm:$0xff]
    %v280 = vld [vmem:[#allocation10 + $0x50] sm:$0xff]
    %v281 = vld [vmem:[#allocation10 + $0x58] sm:$0xff]
    %v282 = vld [vmem:[#allocation10 + $0x60] sm:$0xff]
    %v283 = vld [vmem:[#allocation10 + $0x68] sm:$0xff]
    %v284 = vld [vmem:[#allocation10 + $0x70] sm:$0xff]
    %v285 = vld [vmem:[#allocation10 + $0x78] sm:$0xff]
    %v286 = vld [vmem:[#allocation12] sm:$0xff]
    %v287 = vld [vmem:[#allocation12 + $0x8] sm:$0xff]
    %v288 = vld [vmem:[#allocation12 + $0x10] sm:$0xff]
    %v289 = vld [vmem:[#allocation12 + $0x18] sm:$0xff]
    %v290 = vld [vmem:[#allocation12 + $0x20] sm:$0xff]
    %v291 = vld [vmem:[#allocation12 + $0x28] sm:$0xff]
    %v292 = vld [vmem:[#allocation12 + $0x30] sm:$0xff]
    %v293 = vld [vmem:[#allocation12 + $0x38] sm:$0xff]
    %v294 = vld [vmem:[#allocation12 + $0x40] sm:$0xff]
    %v295 = vld [vmem:[#allocation12 + $0x48] sm:$0xff]
    %v296 = vld [vmem:[#allocation12 + $0x50] sm:$0xff]
    %v297 = vld [vmem:[#allocation12 + $0x58] sm:$0xff]
    %v298 = vld [vmem:[#allocation12 + $0x60] sm:$0xff]
    %v299 = vld [vmem:[#allocation12 + $0x68] sm:$0xff]
    %v300 = vld [vmem:[#allocation12 + $0x70] sm:$0xff]
    %v301 = vld [vmem:[#allocation12 + $0x78] sm:$0xff]
    %302 = vmatprep.subr.mxu0 0.0
    %303 = vmatpush1.msra.mxu0 %v301
    %304 = vmatprep.subr.mxu0 0.0
    %305 = vmatpush1.msra.mxu0 %v300
    %306 = vmatprep.subr.mxu0 0.0
    %307 = vmatpush1.msra.mxu0 %v299
    %308 = vmatprep.subr.mxu0 0.0
    %309 = vmatpush1.msra.mxu0 %v298
    %310 = vmatprep.subr.mxu0 0.0
    %311 = vmatpush1.msra.mxu0 %v297
    %312 = vmatprep.subr.mxu0 0.0
    %313 = vmatpush1.msra.mxu0 %v296
    %314 = vmatprep.subr.mxu0 0.0
    %315 = vmatpush1.msra.mxu0 %v295
    %316 = vmatprep.subr.mxu0 0.0
    %317 = vmatpush1.msra.mxu0 %v294
    %318 = vmatprep.subr.mxu0 0.0
    %319 = vmatpush1.msra.mxu0 %v293
    %320 = vmatprep.subr.mxu0 0.0
    %321 = vmatpush1.msra.mxu0 %v292
    %322 = vmatprep.subr.mxu0 0.0
    %323 = vmatpush1.msra.mxu0 %v291
    %324 = vmatprep.subr.mxu0 0.0
    %325 = vmatpush1.msra.mxu0 %v290
    %326 = vmatprep.subr.mxu0 0.0
    %327 = vmatpush1.msra.mxu0 %v289
    %328 = vmatprep.subr.mxu0 0.0
    %329 = vmatpush1.msra.mxu0 %v288
    %330 = vmatprep.subr.mxu0 0.0
    %331 = vmatpush1.msra.mxu0 %v287
    %332 = vmatprep.subr.mxu0 0.0
    %333 = vmatpush1.msra.mxu0 %v286
    %334 = vmatprep.subr.mxu0 0.0
    %335 = vmatpush2.msra.mxu0 0.0
    %336 = vmatprep.subr.mxu0 0.0
    %337 = vmatpush2.msra.mxu0 0.0
    %338 = vmatprep.subr.mxu0 0.0
    %339 = vmatpush2.msra.mxu0 0.0
    %340 = vmatprep.subr.mxu0 0.0
    %341 = vmatpush2.msra.mxu0 0.0
    %342 = vmatprep.subr.mxu0 0.0
    %343 = vmatpush2.msra.mxu0 0.0
    %344 = vmatprep.subr.mxu0 0.0
    %345 = vmatpush2.msra.mxu0 0.0
    %346 = vmatprep.subr.mxu0 0.0
    %347 = vmatpush2.msra.mxu0 0.0
    %348 = vmatprep.subr.mxu0 0.0
    %349 = vmatpush2.msra.mxu0 0.0
    %350 = vmatprep.subr.mxu0 0.0
    %351 = vmatpush2.msra.mxu0 0.0
    %352 = vmatprep.subr.mxu0 0.0
    %353 = vmatpush2.msra.mxu0 0.0
    %354 = vmatprep.subr.mxu0 0.0
    %355 = vmatpush2.msra.mxu0 0.0
    %356 = vmatprep.subr.mxu0 0.0
    %357 = vmatpush2.msra.mxu0 0.0
    %358 = vmatprep.subr.mxu0 0.0
    %359 = vmatpush2.msra.mxu0 0.0
    %360 = vmatprep.subr.mxu0 0.0
    %361 = vmatpush2.msra.mxu0 0.0
    %362 = vmatprep.subr.mxu0 0.0
    %363 = vmatpush2.msra.mxu0 0.0
    %364 = vmatprep.subr.mxu0 0.0
    %365 = vmatpush2.msra.mxu0 0.0
    %366 = vmatprep.mubr.f32.mxu0 0.0
    %367 = vmatmul.mubr.f32.gmra.mxu0 %v254
    %v368 = vpop.f32.mrf.mxu0
    %v369 = vadd.f32 0.0, %v368
    %v370 = vpop.f32.mrf.mxu0
    %371 = vmatprep.mubr.f32.mxu0 0.0
    %372 = vmatmul.mubr.f32.gmra.mxu0 %v255
    %v373 = vpop.f32.mrf.mxu0
    %v374 = vadd.f32 0.0, %v373
    %v375 = vpop.f32.mrf.mxu0
    %376 = vmatprep.mubr.f32.mxu0 0.0
    %377 = vmatmul.mubr.f32.gmra.mxu0 %v256
    %v378 = vpop.f32.mrf.mxu0
    %v379 = vadd.f32 0.0, %v378
    %v380 = vpop.f32.mrf.mxu0
    %381 = vmatprep.mubr.f32.mxu0 0.0
    %382 = vmatmul.mubr.f32.gmra.mxu0 %v257
    %v383 = vpop.f32.mrf.mxu0
    %v384 = vadd.f32 0.0, %v383
    %v385 = vpop.f32.mrf.mxu0
    %386 = vmatprep.mubr.f32.mxu0 0.0
    %387 = vmatmul.mubr.f32.gmra.mxu0 %v258
    %v388 = vpop.f32.mrf.mxu0
    %v389 = vadd.f32 0.0, %v388
    %v390 = vpop.f32.mrf.mxu0
    %391 = vmatprep.mubr.f32.mxu0 0.0
    %392 = vmatmul.mubr.f32.gmra.mxu0 %v259
    %v393 = vpop.f32.mrf.mxu0
    %v394 = vadd.f32 0.0, %v393
    %v395 = vpop.f32.mrf.mxu0
    %396 = vmatprep.mubr.f32.mxu0 0.0
    %397 = vmatmul.mubr.f32.gmra.mxu0 %v260
    %v398 = vpop.f32.mrf.mxu0
    %v399 = vadd.f32 0.0, %v398
    %v400 = vpop.f32.mrf.mxu0
    %401 = vmatprep.mubr.f32.mxu0 0.0
    %402 = vmatmul.mubr.f32.gmra.mxu0 %v261
    %v403 = vpop.f32.mrf.mxu0
    %v404 = vadd.f32 0.0, %v403
    %v405 = vpop.f32.mrf.mxu0
    %406 = vmatprep.mubr.f32.mxu0 0.0
    %407 = vmatmul.mubr.f32.gmra.mxu0 %v262
    %v408 = vpop.f32.mrf.mxu0
    %v409 = vadd.f32 0.0, %v408
    %v410 = vpop.f32.mrf.mxu0
    %411 = vmatprep.mubr.f32.mxu0 0.0
    %412 = vmatmul.mubr.f32.gmra.mxu0 %v263
    %v413 = vpop.f32.mrf.mxu0
    %v414 = vadd.f32 0.0, %v413
    %v415 = vpop.f32.mrf.mxu0
    %416 = vmatprep.mubr.f32.mxu0 0.0
    %417 = vmatmul.mubr.f32.gmra.mxu0 %v264
    %v418 = vpop.f32.mrf.mxu0
    %v419 = vadd.f32 0.0, %v418
    %v420 = vpop.f32.mrf.mxu0
    %421 = vmatprep.mubr.f32.mxu0 0.0
    %422 = vmatmul.mubr.f32.gmra.mxu0 %v265
    %v423 = vpop.f32.mrf.mxu0
    %v424 = vadd.f32 0.0, %v423
    %v425 = vpop.f32.mrf.mxu0
    %426 = vmatprep.mubr.f32.mxu0 0.0
    %427 = vmatmul.mubr.f32.gmra.mxu0 %v266
    %v428 = vpop.f32.mrf.mxu0
    %v429 = vadd.f32 0.0, %v428
    %v430 = vpop.f32.mrf.mxu0
    %431 = vmatprep.mubr.f32.mxu0 0.0
    %432 = vmatmul.mubr.f32.gmra.mxu0 %v267
    %v433 = vpop.f32.mrf.mxu0
    %v434 = vadd.f32 0.0, %v433
    %v435 = vpop.f32.mrf.mxu0
    %436 = vmatprep.mubr.f32.mxu0 0.0
    %437 = vmatmul.mubr.f32.gmra.mxu0 %v268
    %v438 = vpop.f32.mrf.mxu0
    %v439 = vadd.f32 0.0, %v438
    %v440 = vpop.f32.mrf.mxu0
    %441 = vmatprep.mubr.f32.mxu0 0.0
    %442 = vmatmul.mubr.f32.gmra.mxu0 %v269
    %v443 = vpop.f32.mrf.mxu0
    %v444 = vadd.f32 0.0, %v443
    %v445 = vpop.f32.mrf.mxu0
    %446 = vdwg.mxu0
    %447 = vmatprep.subr.mxu0 0.0
    %448 = vmatpush1.msra.mxu0 %v285
    %449 = vmatprep.subr.mxu0 0.0
    %450 = vmatpush1.msra.mxu0 %v284
    %451 = vmatprep.subr.mxu0 0.0
    %452 = vmatpush1.msra.mxu0 %v283
    %453 = vmatprep.subr.mxu0 0.0
    %454 = vmatpush1.msra.mxu0 %v282
    %455 = vmatprep.subr.mxu0 0.0
    %456 = vmatpush1.msra.mxu0 %v281
    %457 = vmatprep.subr.mxu0 0.0
    %458 = vmatpush1.msra.mxu0 %v280
    %459 = vmatprep.subr.mxu0 0.0
    %460 = vmatpush1.msra.mxu0 %v279
    %461 = vmatprep.subr.mxu0 0.0
    %462 = vmatpush1.msra.mxu0 %v278
    %463 = vmatprep.subr.mxu0 0.0
    %464 = vmatpush1.msra.mxu0 %v277
    %465 = vmatprep.subr.mxu0 0.0
    %466 = vmatpush1.msra.mxu0 %v276
    %467 = vmatprep.subr.mxu0 0.0
    %468 = vmatpush1.msra.mxu0 %v275
    %469 = vmatprep.subr.mxu0 0.0
    %470 = vmatpush1.msra.mxu0 %v274
    %471 = vmatprep.subr.mxu0 0.0
    %472 = vmatpush1.msra.mxu0 %v273
    %473 = vmatprep.subr.mxu0 0.0
    %474 = vmatpush1.msra.mxu0 %v272
    %475 = vmatprep.subr.mxu0 0.0
    %476 = vmatpush1.msra.mxu0 %v271
    %477 = vmatprep.subr.mxu0 0.0
    %478 = vmatpush1.msra.mxu0 %v270
    %479 = vmatprep.subr.mxu0 0.0
    %480 = vmatpush2.msra.mxu0 0.0
    %481 = vmatprep.subr.mxu0 0.0
    %482 = vmatpush2.msra.mxu0 0.0
    %483 = vmatprep.subr.mxu0 0.0
    %484 = vmatpush2.msra.mxu0 0.0
    %485 = vmatprep.subr.mxu0 0.0
    %486 = vmatpush2.msra.mxu0 0.0
    %487 = vmatprep.subr.mxu0 0.0
    %488 = vmatpush2.msra.mxu0 0.0
    %489 = vmatprep.subr.mxu0 0.0
    %490 = vmatpush2.msra.mxu0 0.0
    %491 = vmatprep.subr.mxu0 0.0
    %492 = vmatpush2.msra.mxu0 0.0
    %493 = vmatprep.subr.mxu0 0.0
    %494 = vmatpush2.msra.mxu0 0.0
    %495 = vmatprep.subr.mxu0 0.0
    %496 = vmatpush2.msra.mxu0 0.0
    %497 = vmatprep.subr.mxu0 0.0
    %498 = vmatpush2.msra.mxu0 0.0
    %499 = vmatprep.subr.mxu0 0.0
    %500 = vmatpush2.msra.mxu0 0.0
    %501 = vmatprep.subr.mxu0 0.0
    %502 = vmatpush2.msra.mxu0 0.0
    %503 = vmatprep.subr.mxu0 0.0
    %504 = vmatpush2.msra.mxu0 0.0
    %505 = vmatprep.subr.mxu0 0.0
    %506 = vmatpush2.msra.mxu0 0.0
    %507 = vmatprep.subr.mxu0 0.0
    %508 = vmatpush2.msra.mxu0 0.0
    %509 = vmatprep.subr.mxu0 0.0
    %510 = vmatpush2.msra.mxu0 0.0
    %511 = vmatprep.mubr.f32.mxu0 0.0
    %512 = vmatmul.mubr.f32.gmra.mxu0 %v77
    %v513 = vpop.f32.mrf.mxu0
    %v514 = vadd.f32 %v369, %v513
    %v515 = vpop.f32.mrf.mxu0
    %516 = vmatprep.mubr.f32.mxu0 0.0
    %517 = vmatmul.mubr.f32.gmra.mxu0 %v78
    %v518 = vpop.f32.mrf.mxu0
    %v519 = vadd.f32 %v374, %v518
    %v520 = vpop.f32.mrf.mxu0
    %521 = vmatprep.mubr.f32.mxu0 0.0
    %522 = vmatmul.mubr.f32.gmra.mxu0 %v79
    %v523 = vpop.f32.mrf.mxu0
    %v524 = vadd.f32 %v379, %v523
    %v525 = vpop.f32.mrf.mxu0
    %526 = vmatprep.mubr.f32.mxu0 0.0
    %527 = vmatmul.mubr.f32.gmra.mxu0 %v80
    %v528 = vpop.f32.mrf.mxu0
    %v529 = vadd.f32 %v384, %v528
    %v530 = vpop.f32.mrf.mxu0
    %531 = vmatprep.mubr.f32.mxu0 0.0
    %532 = vmatmul.mubr.f32.gmra.mxu0 %v81
    %v533 = vpop.f32.mrf.mxu0
    %v534 = vadd.f32 %v389, %v533
    %v535 = vpop.f32.mrf.mxu0
    %536 = vmatprep.mubr.f32.mxu0 0.0
    %537 = vmatmul.mubr.f32.gmra.mxu0 %v82
    %v538 = vpop.f32.mrf.mxu0
    %v539 = vadd.f32 %v394, %v538
    %v540 = vpop.f32.mrf.mxu0
    %541 = vmatprep.mubr.f32.mxu0 0.0
    %542 = vmatmul.mubr.f32.gmra.mxu0 %v83
    %v543 = vpop.f32.mrf.mxu0
    %v544 = vadd.f32 %v399, %v543
    %v545 = vpop.f32.mrf.mxu0
    %546 = vmatprep.mubr.f32.mxu0 0.0
    %547 = vmatmul.mubr.f32.gmra.mxu0 %v84
    %v548 = vpop.f32.mrf.mxu0
    %v549 = vadd.f32 %v404, %v548
    %v550 = vpop.f32.mrf.mxu0
    %551 = vmatprep.mubr.f32.mxu0 0.0
    %552 = vmatmul.mubr.f32.gmra.mxu0 %v85
    %v553 = vpop.f32.mrf.mxu0
    %v554 = vadd.f32 %v409, %v553
    %v555 = vpop.f32.mrf.mxu0
    %556 = vmatprep.mubr.f32.mxu0 0.0
    %557 = vmatmul.mubr.f32.gmra.mxu0 %v86
    %v558 = vpop.f32.mrf.mxu0
    %v559 = vadd.f32 %v414, %v558
    %v560 = vpop.f32.mrf.mxu0
    %561 = vmatprep.mubr.f32.mxu0 0.0
    %562 = vmatmul.mubr.f32.gmra.mxu0 %v87
    %v563 = vpop.f32.mrf.mxu0
    %v564 = vadd.f32 %v419, %v563
    %v565 = vpop.f32.mrf.mxu0
    %566 = vmatprep.mubr.f32.mxu0 0.0
    %567 = vmatmul.mubr.f32.gmra.mxu0 %v88
    %v568 = vpop.f32.mrf.mxu0
    %v569 = vadd.f32 %v424, %v568
    %v570 = vpop.f32.mrf.mxu0
    %571 = vmatprep.mubr.f32.mxu0 0.0
    %572 = vmatmul.mubr.f32.gmra.mxu0 %v89
    %v573 = vpop.f32.mrf.mxu0
    %v574 = vadd.f32 %v429, %v573
    %v575 = vpop.f32.mrf.mxu0
    %576 = vmatprep.mubr.f32.mxu0 0.0
    %577 = vmatmul.mubr.f32.gmra.mxu0 %v90
    %v578 = vpop.f32.mrf.mxu0
    %v579 = vadd.f32 %v434, %v578
    %v580 = vpop.f32.mrf.mxu0
    %581 = vmatprep.mubr.f32.mxu0 0.0
    %582 = vmatmul.mubr.f32.gmra.mxu0 %v91
    %v583 = vpop.f32.mrf.mxu0
    %v584 = vadd.f32 %v439, %v583
    %v585 = vpop.f32.mrf.mxu0
    %586 = vmatprep.mubr.f32.mxu0 0.0
    %587 = vmatmul.mubr.f32.gmra.mxu0 %v92
    %v588 = vpop.f32.mrf.mxu0
    %v589 = vadd.f32 %v444, %v588
    %v590 = vpop.f32.mrf.mxu0
    %591 = vdwg.mxu0
    %v592 = vld [vmem:[%s7] sm:$0x1]
    %v594 = vlaneseq
    %v595 = vshrl.u32 %v594, 7
    %v596 = vsub.s32 0, %v595
    %v597 = vrot.slane %v592, %v596
    %v599 = vadd.f32 %v514, %v597
    %v600 = vadd.f32 %v519, %v597
    %v601 = vadd.f32 %v524, %v597
    %v602 = vadd.f32 %v529, %v597
    %v603 = vadd.f32 %v534, %v597
    %v604 = vadd.f32 %v539, %v597
    %v605 = vadd.f32 %v544, %v597
    %v606 = vadd.f32 %v549, %v597
    %v607 = vadd.f32 %v554, %v597
    %v608 = vadd.f32 %v559, %v597
    %v609 = vadd.f32 %v564, %v597
    %v610 = vadd.f32 %v569, %v597
    %v611 = vadd.f32 %v574, %v597
    %v612 = vadd.f32 %v579, %v597
    %v613 = vadd.f32 %v584, %v597
    %v614 = vadd.f32 %v589, %v597
    %v615 = vmax.f32 %v599, 0.0
    %v616 = vmax.f32 %v600, 0.0
    %v617 = vmax.f32 %v601, 0.0
    %v618 = vmax.f32 %v602, 0.0
    %v619 = vmax.f32 %v603, 0.0
    %v620 = vmax.f32 %v604, 0.0
    %v621 = vmax.f32 %v605, 0.0
    %v622 = vmax.f32 %v606, 0.0
    %v623 = vmax.f32 %v607, 0.0
    %v624 = vmax.f32 %v608, 0.0
    %v625 = vmax.f32 %v609, 0.0
    %v626 = vmax.f32 %v610, 0.0
    %v627 = vmax.f32 %v611, 0.0
    %v628 = vmax.f32 %v612, 0.0
    %v629 = vmax.f32 %v613, 0.0
    %v630 = vmax.f32 %v614, 0.0
    %v631 = vadd.f32 %v615, %v77
    %v632 = vadd.f32 %v616, %v78
    %v633 = vadd.f32 %v617, %v79
    %v634 = vadd.f32 %v618, %v80
    %v635 = vadd.f32 %v619, %v81
    %v636 = vadd.f32 %v620, %v82
    %v637 = vadd.f32 %v621, %v83
    %v638 = vadd.f32 %v622, %v84
    %v639 = vadd.f32 %v623, %v85
    %v640 = vadd.f32 %v624, %v86
    %v641 = vadd.f32 %v625, %v87
    %v642 = vadd.f32 %v626, %v88
    %v643 = vadd.f32 %v627, %v89
    %v644 = vadd.f32 %v628, %v90
    %v645 = vadd.f32 %v629, %v91
    %v646 = vadd.f32 %v630, %v92
    %647 = vst [vmem:[#allocation13] sm:$0xff] %v631
    %648 = vst [vmem:[#allocation13 + $0x8] sm:$0xff] %v632
    %649 = vst [vmem:[#allocation13 + $0x10] sm:$0xff] %v633
    %650 = vst [vmem:[#allocation13 + $0x18] sm:$0xff] %v634
    %651 = vst [vmem:[#allocation13 + $0x20] sm:$0xff] %v635
    %652 = vst [vmem:[#allocation13 + $0x28] sm:$0xff] %v636
    %653 = vst [vmem:[#allocation13 + $0x30] sm:$0xff] %v637
    %654 = vst [vmem:[#allocation13 + $0x38] sm:$0xff] %v638
    %655 = vst [vmem:[#allocation13 + $0x40] sm:$0xff] %v639
    %656 = vst [vmem:[#allocation13 + $0x48] sm:$0xff] %v640
    %657 = vst [vmem:[#allocation13 + $0x50] sm:$0xff] %v641
    %658 = vst [vmem:[#allocation13 + $0x58] sm:$0xff] %v642
    %659 = vst [vmem:[#allocation13 + $0x60] sm:$0xff] %v643
    %660 = vst [vmem:[#allocation13 + $0x68] sm:$0xff] %v644
    %661 = vst [vmem:[#allocation13 + $0x70] sm:$0xff] %v645
    %662 = vst [vmem:[#allocation13 + $0x78] sm:$0xff] %v646
    // Predicated region
    $region37: #{tpu_custom_call.1} parent=1 // pred_check
      _
    $region38: #{tpu_custom_call.1} parent=1 // pred_check_branch
      %664 = sbr.rel (0) target = $region40
    $region39: #{tpu_custom_call.1} parent=1 // pred_region
      %s666 = ssub.s32 2048, 2048
      %667 = vsyncadd [#allocation9], %s666
      %s668 = sshll.u32 [#allocation13], 4
      %s669 = int_to_ptr.vmem [resolvable:$true] %s668
      %674 = dma.vmem_to_hbm [thread:$0]  %s669, 2048, %s8, [#allocation9], 128, 128, 8
    $region40: #{tpu_custom_call.1} parent=1 // pred_fallthru
      _
    // Predicated region
    $region41: #{tpu_custom_call.1} parent=1 // pred_check
      _
    $region42: #{tpu_custom_call.1} parent=1 // pred_check_branch
      %676 = sbr.rel (0) target = $region44
    $region43: #{tpu_custom_call.1} parent=1 // pred_region
      %677 = dma.done [#allocation9], 2048
    $region44: #{tpu_custom_call.1} parent=1 // pred_fallthru
      _
    %678 = vsyncpa [#allocation8], 1
    %679 = vsyncpa [#allocation11], 1
    %680 = vsyncpa [#allocation9], 1

</llo_original>
